<compile_context>
chip_gen: v7x
topology: tpu7x:2x2x1
jax: 0.10.0
libtpu: 0.0.40
codegen_flags: <defaults>
</compile_context>

<pallas_src>
import jax
import jax.numpy as jnp
from jax.experimental import pallas as pl
from jax.experimental.pallas import tpu as pltpu

HIDDEN = 16   # hidden_size in the PyTorch module
OUT = 2       # final linear output features


def _round_up(n, m):
    return ((n + m - 1) // m) * m


def mlp_kernel(xt_ref, w1_ref, w2_ref, b2_ref, w3_ref, b3_ref, ot_ref):
    # xt_ref: (H, TB) in the streaming dtype.  Weights are kept in PyTorch
    # (out_features, in_features) layout, so the transposed forward is simply
    # y^T = W @ x^T (+ b[:, None]).
    xt = xt_ref[...]

    # linear1 (no bias) + ReLU   -- MXU matmul, f32 accumulation
    h1 = jnp.dot(w1_ref[...], xt, preferred_element_type=jnp.float32)
    h1 = jnp.maximum(h1, 0.0)                                    # f32 VPU path

    # linear2 (bias) + ReLU
    h2 = jnp.dot(w2_ref[...], h1.astype(w2_ref.dtype),
                 preferred_element_type=jnp.float32)
    h2 = jnp.maximum(h2 + b2_ref[...], 0.0)                      # (H,1) lane-bcast

    # linear3 (bias)
    out = jnp.dot(w3_ref[...], h2.astype(w3_ref.dtype),
                  preferred_element_type=jnp.float32)
    ot_ref[...] = (out + b3_ref[...]).astype(ot_ref.dtype)


def naive_mlp(x, w1, w2, b2, w3, b3, *, stream_dtype=jnp.float32, block_b=4096):
    """x: (B, HIDDEN) f32.  Weights in PyTorch layout: w1, w2 (H, H), w3 (OUT, H);
    biases b2 (H,), b3 (OUT,).  Returns (B, OUT) f32."""
    B, H = x.shape
    out_f = w3.shape[0]

    # Batch goes on the lane axis; pad it up to a multiple of the lane tile.
    tb = min(_round_up(block_b, 128), _round_up(B, 128))
    bp = _round_up(B, tb)
    xt = x.T
    if bp != B:
        xt = jnp.pad(xt, ((0, 0), (0, bp - B)))

    xt = xt.astype(stream_dtype)
    w1s = w1.astype(stream_dtype)
    w2s = w2.astype(stream_dtype)
    w3s = w3.astype(stream_dtype)
    b2c = b2.reshape(H, 1).astype(jnp.float32)
    b3c = b3.reshape(out_f, 1).astype(jnp.float32)

    grid = (bp // tb,)
    out_t = pl.pallas_call(
        mlp_kernel,
        out_shape=jax.ShapeDtypeStruct((out_f, bp), jnp.float32),
        grid=grid,
        in_specs=[
            pl.BlockSpec((H, tb), lambda i: (0, i)),        # x^T tile (streamed)
            pl.BlockSpec((H, H), lambda i: (0, 0)),         # w1 (VMEM-resident)
            pl.BlockSpec((H, H), lambda i: (0, 0)),         # w2
            pl.BlockSpec((H, 1), lambda i: (0, 0)),         # b2
            pl.BlockSpec((out_f, H), lambda i: (0, 0)),     # w3
            pl.BlockSpec((out_f, 1), lambda i: (0, 0)),     # b3
        ],
        out_specs=pl.BlockSpec((out_f, tb), lambda i: (0, i)),
        compiler_params=pltpu.CompilerParams(
            dimension_semantics=("parallel",)),
    )(xt, w1s, w2s, b2c, w3s, b3c)

    return out_t[:, :B].T


def init_params(key, hidden=HIDDEN, out=OUT):
    """PyTorch-default-style init, PyTorch weight layout (out_features, in_features)."""
    k1, k2, k3, k4, k5 = jax.random.split(key, 5)
    bound = 1.0 / jnp.sqrt(hidden)
    w1 = jax.random.uniform(k1, (hidden, hidden), jnp.float32, -bound, bound)
    w2 = jax.random.uniform(k2, (hidden, hidden), jnp.float32, -bound, bound)
    b2 = jax.random.uniform(k3, (hidden,), jnp.float32, -bound, bound)
    w3 = jax.random.uniform(k4, (out, hidden), jnp.float32, -bound, bound)
    b3 = jax.random.uniform(k5, (out,), jnp.float32, -bound, bound)
    return w1, w2, b2, w3, b3


def reference_mlp(x, w1, w2, b2, w3, b3):
    h1 = jnp.maximum(x @ w1.T, 0.0)
    h2 = jnp.maximum(h1 @ w2.T + b2, 0.0)
    return h2 @ w3.T + b3


if __name__ == "__main__":
    key = jax.random.PRNGKey(0)
    kx, kp = jax.random.split(key)
    batch = 8
    x = jax.random.normal(kx, (batch, HIDDEN), jnp.float32)
    params = init_params(kp)
    ref = reference_mlp(x, *params)

    # f32 streaming path (exact)
    out_f32 = jax.block_until_ready(naive_mlp(x, *params))
    assert out_f32.shape == (batch, OUT), out_f32.shape
    assert jnp.allclose(out_f32, ref, atol=1e-5, rtol=1e-5), "f32 mismatch vs reference"

    # bf16 streaming path (memory-bandwidth optimization; loose tolerance)
    out_bf16 = jax.block_until_ready(
        naive_mlp(x, *params, stream_dtype=jnp.bfloat16))
    assert out_bf16.shape == (batch, OUT), out_bf16.shape
    assert jnp.allclose(out_bf16, ref, atol=1e-1, rtol=1e-1), "bf16 mismatch vs reference"

    # multi-tile path (exercises the batch grid + padding/clipping logic)
    batch_big = 1000
    x_big = jax.random.normal(kx, (batch_big, HIDDEN), jnp.float32)
    ref_big = reference_mlp(x_big, *params)
    out_big = jax.block_until_ready(naive_mlp(x_big, *params, block_b=256))
    assert out_big.shape == (batch_big, OUT), out_big.shape
    assert jnp.allclose(out_big, ref_big, atol=1e-5, rtol=1e-5), "multi-tile mismatch"

    print("KERNEL_OK")
</pallas_src>

<mosaic_0001>
module attributes {stable_mosaic.version = 11 : i64} {
  func.func @mlp_kernel(%arg0: i32, %arg1: memref<16x128xf32, #tpu.memory_space<vmem>>, %arg2: memref<16x16xf32, #tpu.memory_space<vmem>>, %arg3: memref<16x16xf32, #tpu.memory_space<vmem>>, %arg4: memref<16x1xf32, #tpu.memory_space<vmem>>, %arg5: memref<2x16xf32, #tpu.memory_space<vmem>>, %arg6: memref<2x1xf32, #tpu.memory_space<vmem>>, %arg7: memref<2x128xf32, #tpu.memory_space<vmem>>) attributes {dimension_semantics = [#tpu.dimension_semantics<parallel>], iteration_bounds = array<i64: 1>, scalar_prefetch = 0 : i64, scratch_operands = 0 : i64, tpu.core_type = #tpu.core_type<tc>, window_params = [{transform_indices = @transform_0, window_bounds = array<i64: 16, 128>}, {pipeline_mode = #tpu.pipeline_mode<synchronous>, transform_indices = @transform_1, window_bounds = array<i64: 16, 16>}, {pipeline_mode = #tpu.pipeline_mode<synchronous>, transform_indices = @transform_2, window_bounds = array<i64: 16, 16>}, {pipeline_mode = #tpu.pipeline_mode<synchronous>, transform_indices = @transform_3, window_bounds = array<i64: 16, 1>}, {pipeline_mode = #tpu.pipeline_mode<synchronous>, transform_indices = @transform_4, window_bounds = array<i64: 2, 16>}, {pipeline_mode = #tpu.pipeline_mode<synchronous>, transform_indices = @transform_5, window_bounds = array<i64: 2, 1>}, {transform_indices = @transform_6, window_bounds = array<i64: 2, 128>}]} {
    %c0 = arith.constant 0 : index
    %c0_0 = arith.constant 0 : index
    %0 = vector.load %arg1[%c0, %c0_0] : memref<16x128xf32, #tpu.memory_space<vmem>>, vector<16x128xf32>
    %c0_1 = arith.constant 0 : index
    %c0_2 = arith.constant 0 : index
    %1 = vector.load %arg2[%c0_1, %c0_2] : memref<16x16xf32, #tpu.memory_space<vmem>>, vector<16x16xf32>
    %cst = arith.constant dense<0.000000e+00> : vector<16x128xf32>
    %2 = tpu.matmul %1, %0, %cst {dimension_numbers = #tpu.dot_dimension_numbers<[1], [0], [0], [1], [0, 0, 1, 1], [], []>} : vector<16x16xf32>, vector<16x128xf32>, vector<16x128xf32> -> vector<16x128xf32>
    %cst_3 = arith.constant 0.000000e+00 : f32
    %3 = vector.broadcast %cst_3 : f32 to vector<16x128xf32>
    %4 = arith.maximumf %2, %3 : vector<16x128xf32>
    %c0_4 = arith.constant 0 : index
    %c0_5 = arith.constant 0 : index
    %5 = vector.load %arg3[%c0_4, %c0_5] : memref<16x16xf32, #tpu.memory_space<vmem>>, vector<16x16xf32>
    %cst_6 = arith.constant dense<0.000000e+00> : vector<16x128xf32>
    %6 = tpu.matmul %5, %4, %cst_6 {dimension_numbers = #tpu.dot_dimension_numbers<[1], [0], [0], [1], [0, 0, 1, 1], [], []>} : vector<16x16xf32>, vector<16x128xf32>, vector<16x128xf32> -> vector<16x128xf32>
    %c0_7 = arith.constant 0 : index
    %c0_8 = arith.constant 0 : index
    %7 = vector.load %arg4[%c0_7, %c0_8] : memref<16x1xf32, #tpu.memory_space<vmem>>, vector<16x1xf32>
    %8 = vector.broadcast %7 : vector<16x1xf32> to vector<16x128xf32>
    %9 = arith.addf %6, %8 : vector<16x128xf32>
    %cst_9 = arith.constant 0.000000e+00 : f32
    %10 = vector.broadcast %cst_9 : f32 to vector<16x128xf32>
    %11 = arith.maximumf %9, %10 : vector<16x128xf32>
    %c0_10 = arith.constant 0 : index
    %c0_11 = arith.constant 0 : index
    %12 = vector.load %arg5[%c0_10, %c0_11] : memref<2x16xf32, #tpu.memory_space<vmem>>, vector<2x16xf32>
    %cst_12 = arith.constant dense<0.000000e+00> : vector<2x128xf32>
    %13 = tpu.matmul %12, %11, %cst_12 {dimension_numbers = #tpu.dot_dimension_numbers<[1], [0], [0], [1], [0, 0, 1, 1], [], []>} : vector<2x16xf32>, vector<16x128xf32>, vector<2x128xf32> -> vector<2x128xf32>
    %c0_13 = arith.constant 0 : index
    %c0_14 = arith.constant 0 : index
    %14 = vector.load %arg6[%c0_13, %c0_14] : memref<2x1xf32, #tpu.memory_space<vmem>>, vector<2x1xf32>
    %15 = vector.broadcast %14 : vector<2x1xf32> to vector<2x128xf32>
    %16 = arith.addf %13, %15 : vector<2x128xf32>
    %c0_15 = arith.constant 0 : index
    %c0_16 = arith.constant 0 : index
    %17 = vector.load %arg7[%c0_15, %c0_16] : memref<2x128xf32, #tpu.memory_space<vmem>>, vector<2x128xf32>
    tpu.vector_store %arg7[%c0_15, %c0_16], %16 {strides = array<i32>} : memref<2x128xf32, #tpu.memory_space<vmem>>, vector<2x128xf32>,
    return
  }
  func.func @transform_0(%arg0: i32) -> (i32, i32) {
    %c0_i32 = arith.constant 0 : i32
    %c0_i32_0 = arith.constant 0 : i32
    return %c0_i32, %arg0 : i32, i32
  }
  func.func @transform_1(%arg0: i32) -> (i32, i32) {
    %c0_i32 = arith.constant 0 : i32
    %c0_i32_0 = arith.constant 0 : i32
    %c0_i32_1 = arith.constant 0 : i32
    return %c0_i32, %c0_i32_0 : i32, i32
  }
  func.func @transform_2(%arg0: i32) -> (i32, i32) {
    %c0_i32 = arith.constant 0 : i32
    %c0_i32_0 = arith.constant 0 : i32
    %c0_i32_1 = arith.constant 0 : i32
    return %c0_i32, %c0_i32_0 : i32, i32
  }
  func.func @transform_3(%arg0: i32) -> (i32, i32) {
    %c0_i32 = arith.constant 0 : i32
    %c0_i32_0 = arith.constant 0 : i32
    %c0_i32_1 = arith.constant 0 : i32
    return %c0_i32, %c0_i32_0 : i32, i32
  }
  func.func @transform_4(%arg0: i32) -> (i32, i32) {
    %c0_i32 = arith.constant 0 : i32
    %c0_i32_0 = arith.constant 0 : i32
    %c0_i32_1 = arith.constant 0 : i32
    return %c0_i32, %c0_i32_0 : i32, i32
  }
  func.func @transform_5(%arg0: i32) -> (i32, i32) {
    %c0_i32 = arith.constant 0 : i32
    %c0_i32_0 = arith.constant 0 : i32
    %c0_i32_1 = arith.constant 0 : i32
    return %c0_i32, %c0_i32_0 : i32, i32
  }
  func.func @transform_6(%arg0: i32) -> (i32, i32) {
    %c0_i32 = arith.constant 0 : i32
    %c0_i32_0 = arith.constant 0 : i32
    return %c0_i32, %arg0 : i32, i32
  }
}

</mosaic_0001>

<llo_original>
// kernel: tpu_custom_call.1
$region0: #{tpu_custom_call.1}
  #allocation0 [shape = 'u32[]', space=smem, size = 0x4, offset = 0x4, fixed_abs, tag = 'smem constant byte address 0x4 - core index']
  #allocation1 [shape = 'u32[144,128]{1,0:T(1,128)}', space=vmem, size = 0x12000, scoped, tag = 'internal scratch']
  %s0 = inlined_call_operand.vmem [shape: f32[16,128], index: 0, kind: input, shape index: {}]
  %s1 = inlined_call_operand.hbm [shape: f32[16,16], index: 1, kind: input, shape index: {}]
  %s2 = inlined_call_operand.hbm [shape: f32[16,16], index: 2, kind: input, shape index: {}]
  %s3 = inlined_call_operand.vmem [shape: f32[16,1], index: 3, kind: input, shape index: {}]
  %s4 = inlined_call_operand.vmem [shape: f32[2,16], index: 4, kind: input, shape index: {}]
  %s5 = inlined_call_operand.vmem [shape: f32[2,1], index: 5, kind: input, shape index: {}]
  %s6 = inlined_call_operand.hbm [shape: f32[2,128], index: 6, kind: output, shape index: {}]
  %s7 = sld [smem:[#allocation0]]
  $region42: #{tpu_custom_call.1} parent=0
    _
  %s9 = ssub.s32 1, %s7
  %s10 = scalar_select 0, %s9, %s7
  $region1: #{tpu_custom_call.1} parent=0
    #allocation2 [shape = 'u8[8192]{0}', space=vmem, size = 0x2000, scoped, tag = 'input window, operand 1, single buffered']
    #allocation3 [shape = 's32[1]{0}', space=sflag, size = 0x4, scoped, tag = 'scoped memory for tpu_custom_call.1']
    #allocation4 [shape = 's32[1]{0}', space=sflag, size = 0x4, scoped, tag = 'scoped memory for tpu_custom_call.1']
    #allocation5 [shape = 'u8[8192]{0}', space=vmem, size = 0x2000, scoped, tag = 'input window, operand 2, single buffered']
    #allocation6 [shape = 's32[1]{0}', space=sflag, size = 0x4, scoped, tag = 'scoped memory for tpu_custom_call.1']
    #allocation7 [shape = 'u8[1024]{0}', space=vmem, size = 0x400, scoped, tag = 'output window, operand 0, single buffered']
    %11 = vsyncpa [#allocation3], 0
    %12 = vsyncpa [#allocation6], 0
    %13 = vsyncpa [#allocation4], 0
    // Predicated region
    $region2: #{tpu_custom_call.1} parent=1 // pred_check
      _
    $region3: #{tpu_custom_call.1} parent=1 // pred_check_branch
      %15 = sbr.rel (0) target = $region5
    $region4: #{tpu_custom_call.1} parent=1 // pred_region
      _
    $region5: #{tpu_custom_call.1} parent=1 // pred_fallthru
      _
    // Predicated region
    $region6: #{tpu_custom_call.1} parent=1 // pred_check
      _
    $region7: #{tpu_custom_call.1} parent=1 // pred_check_branch
      %17 = sbr.rel (0) target = $region9
    $region8: #{tpu_custom_call.1} parent=1 // pred_region
      %s19 = ssub.s32 256, 256
      %20 = vsyncadd [#allocation3], %s19
      %s21 = sshll.u32 [#allocation2], 4
      %s22 = int_to_ptr.vmem [resolvable:$true] %s21
      %27 = dma.hbm_to_vmem [thread:$0]  %s1, 256, %s22, [#allocation3], 128, 128, 8
    $region9: #{tpu_custom_call.1} parent=1 // pred_fallthru
      _
    // Predicated region
    $region10: #{tpu_custom_call.1} parent=1 // pred_check
      _
    $region11: #{tpu_custom_call.1} parent=1 // pred_check_branch
      %29 = sbr.rel (0) target = $region13
    $region12: #{tpu_custom_call.1} parent=1 // pred_region
      %s31 = ssub.s32 256, 256
      %32 = vsyncadd [#allocation6], %s31
      %s33 = sshll.u32 [#allocation5], 4
      %s34 = int_to_ptr.vmem [resolvable:$true] %s33
      %39 = dma.hbm_to_vmem [thread:$0]  %s2, 256, %s34, [#allocation6], 128, 128, 8
    $region13: #{tpu_custom_call.1} parent=1 // pred_fallthru
      _
    // Predicated region
    $region14: #{tpu_custom_call.1} parent=1 // pred_check
      _
    $region15: #{tpu_custom_call.1} parent=1 // pred_check_branch
      %41 = sbr.rel (0) target = $region17
    $region16: #{tpu_custom_call.1} parent=1 // pred_region
      _
    $region17: #{tpu_custom_call.1} parent=1 // pred_fallthru
      _
    // Predicated region
    $region18: #{tpu_custom_call.1} parent=1 // pred_check
      _
    $region19: #{tpu_custom_call.1} parent=1 // pred_check_branch
      %43 = sbr.rel (0) target = $region21
    $region20: #{tpu_custom_call.1} parent=1 // pred_region
      _
    $region21: #{tpu_custom_call.1} parent=1 // pred_fallthru
      _
    // Predicated region
    $region22: #{tpu_custom_call.1} parent=1 // pred_check
      _
    $region23: #{tpu_custom_call.1} parent=1 // pred_check_branch
      %45 = sbr.rel (0) target = $region25
    $region24: #{tpu_custom_call.1} parent=1 // pred_region
      _
    $region25: #{tpu_custom_call.1} parent=1 // pred_fallthru
      _
    // Predicated region
    $region26: #{tpu_custom_call.1} parent=1 // pred_check
      _
    $region27: #{tpu_custom_call.1} parent=1 // pred_check_branch
      %47 = sbr.rel (0) target = $region29
    $region28: #{tpu_custom_call.1} parent=1 // pred_region
      %48 = dma.done [#allocation3], 256
    $region29: #{tpu_custom_call.1} parent=1 // pred_fallthru
      _
    // Predicated region
    $region30: #{tpu_custom_call.1} parent=1 // pred_check
      _
    $region31: #{tpu_custom_call.1} parent=1 // pred_check_branch
      %50 = sbr.rel (0) target = $region33
    $region32: #{tpu_custom_call.1} parent=1 // pred_region
      %51 = dma.done [#allocation6], 256
    $region33: #{tpu_custom_call.1} parent=1 // pred_fallthru
      _
    %v52 = vld [vmem:[%s0] sm:$0xff]
    %v53 = vld [vmem:[%s0 + $0x8] sm:$0xff]
    %v54 = vld [vmem:[#allocation2] sm:$0xff]
    %v55 = vld [vmem:[#allocation2 + $0x8] sm:$0xff]
    %vm56 = vcmask 130048
    %v58 = vsel %vm56, %v54, 0
    %v61 = vsel %vm56, %v55, 0
    %63 = vmatprep.subr.mxu0 0.0
    %64 = vmatpush1.msra.mxu0 %v52
    %65 = vmatprep.subr.mxu0 0.0
    %66 = vmatpush1.msra.mxu0 %v53
    %67 = vmatprep.subr.mxu0 0.0
    %68 = vmatpush1.msra.mxu0 0.0
    %69 = vmatprep.subr.mxu0 0.0
    %70 = vmatpush1.msra.mxu0 0.0
    %71 = vmatprep.subr.mxu0 0.0
    %72 = vmatpush1.msra.mxu0 0.0
    %73 = vmatprep.subr.mxu0 0.0
    %74 = vmatpush1.msra.mxu0 0.0
    %75 = vmatprep.subr.mxu0 0.0
    %76 = vmatpush1.msra.mxu0 0.0
    %77 = vmatprep.subr.mxu0 0.0
    %78 = vmatpush1.msra.mxu0 0.0
    %79 = vmatprep.subr.mxu0 0.0
    %80 = vmatpush1.msra.mxu0 0.0
    %81 = vmatprep.subr.mxu0 0.0
    %82 = vmatpush1.msra.mxu0 0.0
    %83 = vmatprep.subr.mxu0 0.0
    %84 = vmatpush1.msra.mxu0 0.0
    %85 = vmatprep.subr.mxu0 0.0
    %86 = vmatpush1.msra.mxu0 0.0
    %87 = vmatprep.subr.mxu0 0.0
    %88 = vmatpush1.msra.mxu0 0.0
    %89 = vmatprep.subr.mxu0 0.0
    %90 = vmatpush1.msra.mxu0 0.0
    %91 = vmatprep.subr.mxu0 0.0
    %92 = vmatpush1.msra.mxu0 0.0
    %93 = vmatprep.subr.mxu0 0.0
    %94 = vmatpush1.msra.mxu0 0.0
    %95 = vmatprep.subr.mxu0 0.0
    %96 = vmatpush1.msra.mxu0 0.0
    %97 = vmatprep.subr.mxu0 0.0
    %98 = vmatpush1.msra.mxu0 0.0
    %99 = vmatprep.subr.mxu0 0.0
    %100 = vmatpush1.msra.mxu0 0.0
    %101 = vmatprep.subr.mxu0 0.0
    %102 = vmatpush1.msra.mxu0 0.0
    %103 = vmatprep.subr.mxu0 0.0
    %104 = vmatpush1.msra.mxu0 0.0
    %105 = vmatprep.subr.mxu0 0.0
    %106 = vmatpush1.msra.mxu0 0.0
    %107 = vmatprep.subr.mxu0 0.0
    %108 = vmatpush1.msra.mxu0 0.0
    %109 = vmatprep.subr.mxu0 0.0
    %110 = vmatpush1.msra.mxu0 0.0
    %111 = vmatprep.subr.mxu0 0.0
    %112 = vmatpush1.msra.mxu0 0.0
    %113 = vmatprep.subr.mxu0 0.0
    %114 = vmatpush1.msra.mxu0 0.0
    %115 = vmatprep.subr.mxu0 0.0
    %116 = vmatpush1.msra.mxu0 0.0
    %117 = vmatprep.subr.mxu0 0.0
    %118 = vmatpush1.msra.mxu0 0.0
    %119 = vmatprep.subr.mxu0 0.0
    %120 = vmatpush1.msra.mxu0 0.0
    %121 = vmatprep.subr.mxu0 0.0
    %122 = vmatpush1.msra.mxu0 0.0
    %123 = vmatprep.subr.mxu0 0.0
    %124 = vmatpush1.msra.mxu0 0.0
    %125 = vmatprep.subr.mxu0 0.0
    %126 = vmatpush1.msra.mxu0 0.0
    %127 = vmatprep.mubr.f32.mxu0 0.0
    %128 = vmatmul.mubr.f32.gmra.mrb[0].mxu0 %v58
    %v129 = vpop.f32.mrb[0].mxu0
    %v130 = vadd.f32 0.0, %v129
    %v131 = vpop.f32.mrb[0].mxu0
    %132 = vmatprep.mubr.f32.mxu0 0.0
    %133 = vmatmul.mubr.f32.gmra.mrb[0].mxu0 %v61
    %v134 = vpop.f32.mrb[0].mxu0
    %v135 = vadd.f32 0.0, %v134
    %v136 = vpop.f32.mrb[0].mxu0
    %137 = vdwg.mxu0
    %v138 = vmax.f32 %v130, 0.0
    %v139 = vmax.f32 %v135, 0.0
    %v140 = vld [vmem:[#allocation5] sm:$0xff]
    %v141 = vld [vmem:[#allocation5 + $0x8] sm:$0xff]
    %v142 = vld [vmem:[%s3] sm:$0xff]
    %v143 = vld [vmem:[%s3 + $0x8] sm:$0xff]
    %145 = vset.pattern.permute.xlu0 0
    %146 = vperm.xlu0 %145, %v142
    %v147 = vpop.permute.xlu0 %146
    %150 = vset.pattern.permute.xlu0 0
    %151 = vperm.xlu0 %150, %v143
    %v152 = vpop.permute.xlu0 %151
    %v155 = vsel %vm56, %v140, 0
    %v158 = vsel %vm56, %v141, 0
    %160 = vmatprep.subr.mxu0 0.0
    %161 = vmatpush1.msra.mxu0 %v138
    %162 = vmatprep.subr.mxu0 0.0
    %163 = vmatpush1.msra.mxu0 %v139
    %164 = vmatprep.subr.mxu0 0.0
    %165 = vmatpush1.msra.mxu0 0.0
    %166 = vmatprep.subr.mxu0 0.0
    %167 = vmatpush1.msra.mxu0 0.0
    %168 = vmatprep.subr.mxu0 0.0
    %169 = vmatpush1.msra.mxu0 0.0
    %170 = vmatprep.subr.mxu0 0.0
    %171 = vmatpush1.msra.mxu0 0.0
    %172 = vmatprep.subr.mxu0 0.0
    %173 = vmatpush1.msra.mxu0 0.0
    %174 = vmatprep.subr.mxu0 0.0
    %175 = vmatpush1.msra.mxu0 0.0
    %176 = vmatprep.subr.mxu0 0.0
    %177 = vmatpush1.msra.mxu0 0.0
    %178 = vmatprep.subr.mxu0 0.0
    %179 = vmatpush1.msra.mxu0 0.0
    %180 = vmatprep.subr.mxu0 0.0
    %181 = vmatpush1.msra.mxu0 0.0
    %182 = vmatprep.subr.mxu0 0.0
    %183 = vmatpush1.msra.mxu0 0.0
    %184 = vmatprep.subr.mxu0 0.0
    %185 = vmatpush1.msra.mxu0 0.0
    %186 = vmatprep.subr.mxu0 0.0
    %187 = vmatpush1.msra.mxu0 0.0
    %188 = vmatprep.subr.mxu0 0.0
    %189 = vmatpush1.msra.mxu0 0.0
    %190 = vmatprep.subr.mxu0 0.0
    %191 = vmatpush1.msra.mxu0 0.0
    %192 = vmatprep.subr.mxu0 0.0
    %193 = vmatpush1.msra.mxu0 0.0
    %194 = vmatprep.subr.mxu0 0.0
    %195 = vmatpush1.msra.mxu0 0.0
    %196 = vmatprep.subr.mxu0 0.0
    %197 = vmatpush1.msra.mxu0 0.0
    %198 = vmatprep.subr.mxu0 0.0
    %199 = vmatpush1.msra.mxu0 0.0
    %200 = vmatprep.subr.mxu0 0.0
    %201 = vmatpush1.msra.mxu0 0.0
    %202 = vmatprep.subr.mxu0 0.0
    %203 = vmatpush1.msra.mxu0 0.0
    %204 = vmatprep.subr.mxu0 0.0
    %205 = vmatpush1.msra.mxu0 0.0
    %206 = vmatprep.subr.mxu0 0.0
    %207 = vmatpush1.msra.mxu0 0.0
    %208 = vmatprep.subr.mxu0 0.0
    %209 = vmatpush1.msra.mxu0 0.0
    %210 = vmatprep.subr.mxu0 0.0
    %211 = vmatpush1.msra.mxu0 0.0
    %212 = vmatprep.subr.mxu0 0.0
    %213 = vmatpush1.msra.mxu0 0.0
    %214 = vmatprep.subr.mxu0 0.0
    %215 = vmatpush1.msra.mxu0 0.0
    %216 = vmatprep.subr.mxu0 0.0
    %217 = vmatpush1.msra.mxu0 0.0
    %218 = vmatprep.subr.mxu0 0.0
    %219 = vmatpush1.msra.mxu0 0.0
    %220 = vmatprep.subr.mxu0 0.0
    %221 = vmatpush1.msra.mxu0 0.0
    %222 = vmatprep.subr.mxu0 0.0
    %223 = vmatpush1.msra.mxu0 0.0
    %224 = vmatprep.mubr.f32.mxu0 0.0
    %225 = vmatmul.mubr.f32.gmra.mrb[0].mxu0 %v155
    %v226 = vpop.f32.mrb[0].mxu0
    %v227 = vadd.f32 %v147, %v226
    %v228 = vpop.f32.mrb[0].mxu0
    %229 = vmatprep.mubr.f32.mxu0 0.0
    %230 = vmatmul.mubr.f32.gmra.mrb[0].mxu0 %v158
    %v231 = vpop.f32.mrb[0].mxu0
    %v232 = vadd.f32 %v152, %v231
    %v233 = vpop.f32.mrb[0].mxu0
    %234 = vdwg.mxu0
    %v235 = vmax.f32 %v227, 0.0
    %v236 = vmax.f32 %v232, 0.0
    %v237 = vld [vmem:[%s4] sm:$0x3]
    %v238 = vld [vmem:[%s5] sm:$0x3]
    %240 = vset.pattern.permute.xlu0 0
    %241 = vperm.xlu0 %240, %v238
    %v242 = vpop.permute.xlu0 %241
    %v245 = vsel %vm56, %v237, 0
    %247 = vmatprep.subr.mxu0 0.0
    %248 = vmatpush1.msra.mxu0 %v235
    %249 = vmatprep.subr.mxu0 0.0
    %250 = vmatpush1.msra.mxu0 %v236
    %251 = vmatprep.subr.mxu0 0.0
    %252 = vmatpush1.msra.mxu0 0.0
    %253 = vmatprep.subr.mxu0 0.0
    %254 = vmatpush1.msra.mxu0 0.0
    %255 = vmatprep.subr.mxu0 0.0
    %256 = vmatpush1.msra.mxu0 0.0
    %257 = vmatprep.subr.mxu0 0.0
    %258 = vmatpush1.msra.mxu0 0.0
    %259 = vmatprep.subr.mxu0 0.0
    %260 = vmatpush1.msra.mxu0 0.0
    %261 = vmatprep.subr.mxu0 0.0
    %262 = vmatpush1.msra.mxu0 0.0
    %263 = vmatprep.subr.mxu0 0.0
    %264 = vmatpush1.msra.mxu0 0.0
    %265 = vmatprep.subr.mxu0 0.0
    %266 = vmatpush1.msra.mxu0 0.0
    %267 = vmatprep.subr.mxu0 0.0
    %268 = vmatpush1.msra.mxu0 0.0
    %269 = vmatprep.subr.mxu0 0.0
    %270 = vmatpush1.msra.mxu0 0.0
    %271 = vmatprep.subr.mxu0 0.0
    %272 = vmatpush1.msra.mxu0 0.0
    %273 = vmatprep.subr.mxu0 0.0
    %274 = vmatpush1.msra.mxu0 0.0
    %275 = vmatprep.subr.mxu0 0.0
    %276 = vmatpush1.msra.mxu0 0.0
    %277 = vmatprep.subr.mxu0 0.0
    %278 = vmatpush1.msra.mxu0 0.0
    %279 = vmatprep.subr.mxu0 0.0
    %280 = vmatpush1.msra.mxu0 0.0
    %281 = vmatprep.subr.mxu0 0.0
    %282 = vmatpush1.msra.mxu0 0.0
    %283 = vmatprep.subr.mxu0 0.0
    %284 = vmatpush1.msra.mxu0 0.0
    %285 = vmatprep.subr.mxu0 0.0
    %286 = vmatpush1.msra.mxu0 0.0
    %287 = vmatprep.subr.mxu0 0.0
    %288 = vmatpush1.msra.mxu0 0.0
    %289 = vmatprep.subr.mxu0 0.0
    %290 = vmatpush1.msra.mxu0 0.0
    %291 = vmatprep.subr.mxu0 0.0
    %292 = vmatpush1.msra.mxu0 0.0
    %293 = vmatprep.subr.mxu0 0.0
    %294 = vmatpush1.msra.mxu0 0.0
    %295 = vmatprep.subr.mxu0 0.0
    %296 = vmatpush1.msra.mxu0 0.0
    %297 = vmatprep.subr.mxu0 0.0
    %298 = vmatpush1.msra.mxu0 0.0
    %299 = vmatprep.subr.mxu0 0.0
    %300 = vmatpush1.msra.mxu0 0.0
    %301 = vmatprep.subr.mxu0 0.0
    %302 = vmatpush1.msra.mxu0 0.0
    %303 = vmatprep.subr.mxu0 0.0
    %304 = vmatpush1.msra.mxu0 0.0
    %305 = vmatprep.subr.mxu0 0.0
    %306 = vmatpush1.msra.mxu0 0.0
    %307 = vmatprep.subr.mxu0 0.0
    %308 = vmatpush1.msra.mxu0 0.0
    %309 = vmatprep.subr.mxu0 0.0
    %310 = vmatpush1.msra.mxu0 0.0
    %311 = vmatprep.mubr.f32.mxu0 0.0
    %312 = vmatmul.mubr.f32.gmra.mrb[0].mxu0 %v245
    %v313 = vpop.f32.mrb[0].mxu0
    %v314 = vadd.f32 %v242, %v313
    %v315 = vpop.f32.mrb[0].mxu0
    %316 = vdwg.mxu0
    %317 = vst [vmem:[#allocation7] sm:$0x3] %v314
    // Predicated region
    $region34: #{tpu_custom_call.1} parent=1 // pred_check
      _
    $region35: #{tpu_custom_call.1} parent=1 // pred_check_branch
      %319 = sbr.rel (0) target = $region37
    $region36: #{tpu_custom_call.1} parent=1 // pred_region
      %s321 = ssub.s32 32, 32
      %322 = vsyncadd [#allocation4], %s321
      %s324 = sshll.u32 [#allocation7], 4
      %s325 = int_to_ptr.vmem [resolvable:$true] %s324
      %327 = dma.vmem_to_hbm [thread:$0]  %s325, 32, %s6, [#allocation4]
    $region37: #{tpu_custom_call.1} parent=1 // pred_fallthru
      _
    // Predicated region
    $region38: #{tpu_custom_call.1} parent=1 // pred_check
      _
    $region39: #{tpu_custom_call.1} parent=1 // pred_check_branch
      %329 = sbr.rel (0) target = $region41
    $region40: #{tpu_custom_call.1} parent=1 // pred_region
      %330 = dma.done [#allocation4], 32
    $region41: #{tpu_custom_call.1} parent=1 // pred_fallthru
      _
    %331 = vsyncpa [#allocation3], 1
    %332 = vsyncpa [#allocation6], 1
    %333 = vsyncpa [#allocation4], 1

</llo_original>
